<compile_context>
chip_gen: v5e
topology: v5e:2x2
jax: 0.10.0
libtpu: 0.0.40
codegen_flags: <defaults>
</compile_context>

<pallas_src>
import functools

import jax
import jax.numpy as jnp
from jax import lax
from jax.experimental import pallas as pl
from jax.experimental.pallas import tpu as pltpu

_LANES = 128
_SUBLANES = 8
_INV_SQRT2 = 0.7071067811865476


def _round_up(n, m):
    return ((n + m - 1) // m) * m


def _projection_head_kernel(x_ref, w1_ref, b1_ref, w2_ref, b2_ref,
                            gamma_ref, beta_ref, o_ref, *, inv_p):
    # x tile may arrive as f32 (unpadded fast path) or bf16 (padded path);
    # MXU operands are bf16 either way, accumulation in f32.
    x_bf16 = x_ref[...].astype(jnp.bfloat16)
    projected = jnp.dot(x_bf16, w1_ref[...],
                        preferred_element_type=jnp.float32) + b1_ref[...]   # (TB, Pp) f32

    # Exact GELU: 0.5 * x * (1 + erf(x / sqrt(2)))  -- f32 EUP transcendental path.
    h = 0.5 * projected * (1.0 + lax.erf(projected * _INV_SQRT2))

    # fc = Linear(projection_dim -> projection_dim): bf16 operands, f32 accumulate.
    y = jnp.dot(h.astype(jnp.bfloat16), w2_ref[...],
                preferred_element_type=jnp.float32) + b2_ref[...]           # (TB, Pp) f32

    # TODO(synk): nn.Dropout(p=0.5) is identity in eval mode; training-mode
    # stochastic masking (pltpu.prng_random_bits) intentionally not applied here.

    # residual
    z = y + projected

    # One-pass LayerNorm statistics.  Padded feature lanes of z are exactly
    # zero (zero-padded weight columns / biases), so lane-axis sums equal the
    # sums over the real P features; mean/var divide by the real P via inv_p.
    s1 = jnp.sum(z, axis=-1, keepdims=True)
    s2 = jnp.sum(z * z, axis=-1, keepdims=True)
    mean = s1 * inv_p
    var = s2 * inv_p - mean * mean
    zn = (z - mean) * lax.rsqrt(var + 1e-5)

    # gamma/beta are zero in padded lanes -> padded output lanes are exactly 0;
    # the wrapper slices them off.  Store is lane-dense (Pp multiple of 128).
    o_ref[...] = (zn * gamma_ref[...] + beta_ref[...]).astype(o_ref.dtype)


def projection_head(x, w1, b1, w2, b2, gamma, beta, *, block_b=512):
    """Fused CLIP ProjectionHead forward.

    x: (B, E) float32. w1: (E, P), w2: (P, P), b1/b2/gamma/beta: (P,).
    Weights are pre-transposed (in_features, out_features).
    block_b: batch tile (rows per grid step); sweep 256/512/1024 on real shapes.
    """
    B, E = x.shape
    P = w1.shape[1]

    # Lane-dense padding of the feature dims; batch tile kept a multiple of 8.
    Ep = _round_up(E, _LANES)
    Pp = _round_up(P, _LANES)
    block_b = max(_SUBLANES, min(block_b, _round_up(B, _SUBLANES)))
    block_b = _round_up(block_b, _SUBLANES)
    Bp = _round_up(B, block_b)

    # Zero-padding keeps the math exact: padded E columns of x / rows of W1
    # contribute exact zeros to the first matmul; padded P columns of W1/W2 and
    # padded bias lanes make projected/y/z exactly zero in the padded lanes.
    w1p = jnp.zeros((Ep, Pp), jnp.bfloat16).at[:E, :P].set(w1.astype(jnp.bfloat16))
    w2p = jnp.zeros((Pp, Pp), jnp.bfloat16).at[:P, :P].set(w2.astype(jnp.bfloat16))
    b1p = jnp.zeros((1, Pp), jnp.float32).at[0, :P].set(b1)
    b2p = jnp.zeros((1, Pp), jnp.float32).at[0, :P].set(b2)
    gp = jnp.zeros((1, Pp), jnp.float32).at[0, :P].set(gamma)
    bp = jnp.zeros((1, Pp), jnp.float32).at[0, :P].set(beta)

    if E == Ep and B == Bp:
        # Fast path: stream x as-is (f32) and cast to bf16 inside the kernel.
        # Avoids an extra full HBM read+write pass over x in the wrapper.
        xp = x
        x_bytes = B * E * x.dtype.itemsize
    else:
        # Ragged shapes: zero-pad once; pad in bf16 to halve the write traffic.
        xp = jnp.zeros((Bp, Ep), jnp.bfloat16).at[:B, :E].set(x.astype(jnp.bfloat16))
        x_bytes = Bp * Ep * 2

    grid = (Bp // block_b,)

    cost = pl.CostEstimate(
        flops=2 * B * (E * P + P * P),
        transcendentals=B * P,  # erf
        bytes_accessed=(x_bytes + w1p.size * 2 + w2p.size * 2
                        + 4 * Pp * 4 + Bp * Pp * 4),
    )

    out = pl.pallas_call(
        functools.partial(_projection_head_kernel, inv_p=1.0 / float(P)),
        out_shape=jax.ShapeDtypeStruct((Bp, Pp), x.dtype),
        grid_spec=pltpu.PrefetchScalarGridSpec(
            num_scalar_prefetch=0,
            grid=grid,
            in_specs=[
                pl.BlockSpec((block_b, Ep), lambda i: (i, 0)),   # x tile (streamed)
                pl.BlockSpec((Ep, Pp), lambda i: (0, 0)),        # W1 (resident, bf16)
                pl.BlockSpec((1, Pp), lambda i: (0, 0)),         # b1
                pl.BlockSpec((Pp, Pp), lambda i: (0, 0)),        # W2 (resident, bf16)
                pl.BlockSpec((1, Pp), lambda i: (0, 0)),         # b2
                pl.BlockSpec((1, Pp), lambda i: (0, 0)),         # gamma
                pl.BlockSpec((1, Pp), lambda i: (0, 0)),         # beta
            ],
            out_specs=pl.BlockSpec((block_b, Pp), lambda i: (i, 0)),
        ),
        compiler_params=pltpu.CompilerParams(
            dimension_semantics=("parallel",)),
        cost_estimate=cost,
    )(xp, w1p, b1p, w2p, b2p, gp, bp)

    return out[:B, :P]


def _reference(x, w1, b1, w2, b2, gamma, beta):
    # Mirrors the kernel's bf16 MXU operands (f32 accumulation) so the check is
    # tight; GELU/LayerNorm math stays f32, like the kernel.
    projected = jnp.dot(x.astype(jnp.bfloat16), w1.astype(jnp.bfloat16),
                        preferred_element_type=jnp.float32) + b1
    h = jax.nn.gelu(projected, approximate=False)
    y = jnp.dot(h.astype(jnp.bfloat16), w2.astype(jnp.bfloat16),
                preferred_element_type=jnp.float32) + b2
    z = y + projected
    mean = jnp.mean(z, axis=-1, keepdims=True)
    var = jnp.mean((z - mean) ** 2, axis=-1, keepdims=True)
    return (z - mean) * lax.rsqrt(var + 1e-5) * gamma + beta


if __name__ == "__main__":
    # Small shapes implied by the forward: x is (batch, embedding_dim).
    B, E, P = 8, 32, 64

    key = jax.random.PRNGKey(0)
    kx, kw1, kb1, kw2, kb2 = jax.random.split(key, 5)

    x = jax.random.normal(kx, (B, E), dtype=jnp.float32)

    # Deterministic synthetic parameters (PyTorch-shaped Linears, pre-transposed).
    w1 = jax.random.normal(kw1, (E, P), dtype=jnp.float32) * (1.0 / jnp.sqrt(E))
    b1 = jax.random.normal(kb1, (P,), dtype=jnp.float32) * 0.01
    w2 = jax.random.normal(kw2, (P, P), dtype=jnp.float32) * (1.0 / jnp.sqrt(P))
    b2 = jax.random.normal(kb2, (P,), dtype=jnp.float32) * 0.01
    gamma = jnp.ones((P,), dtype=jnp.float32)
    beta = jnp.zeros((P,), dtype=jnp.float32)

    out = projection_head(x, w1, b1, w2, b2, gamma, beta)
    out = jax.block_until_ready(out)

    ref = _reference(x, w1, b1, w2, b2, gamma, beta)
    assert out.shape == (B, P)
    # Tolerance absorbs erf/rsqrt implementation differences on top of the
    # (mirrored) bf16 operand rounding.
    assert jnp.allclose(out, ref, atol=1e-2, rtol=1e-2), "mismatch vs reference"

    print("KERNEL_OK")
</pallas_src>

<mosaic_0001>
module attributes {stable_mosaic.version = 11 : i64} {
  func.func @_projection_head_kernel(%arg0: i32, %arg1: memref<8x128xbf16, #tpu.memory_space<vmem>>, %arg2: memref<128x128xbf16, #tpu.memory_space<vmem>>, %arg3: memref<1x128xf32, #tpu.memory_space<vmem>>, %arg4: memref<128x128xbf16, #tpu.memory_space<vmem>>, %arg5: memref<1x128xf32, #tpu.memory_space<vmem>>, %arg6: memref<1x128xf32, #tpu.memory_space<vmem>>, %arg7: memref<1x128xf32, #tpu.memory_space<vmem>>, %arg8: memref<8x128xf32, #tpu.memory_space<vmem>>) attributes {dimension_semantics = [#tpu.dimension_semantics<parallel>], iteration_bounds = array<i64: 1>, scalar_prefetch = 0 : i64, scratch_operands = 0 : i64, tpu.core_type = #tpu.core_type<tc>, window_params = [{transform_indices = @transform_0, window_bounds = array<i64: 8, 128>}, {pipeline_mode = #tpu.pipeline_mode<synchronous>, transform_indices = @transform_1, window_bounds = array<i64: 128, 128>}, {pipeline_mode = #tpu.pipeline_mode<synchronous>, transform_indices = @transform_2, window_bounds = array<i64: 1, 128>}, {pipeline_mode = #tpu.pipeline_mode<synchronous>, transform_indices = @transform_3, window_bounds = array<i64: 128, 128>}, {pipeline_mode = #tpu.pipeline_mode<synchronous>, transform_indices = @transform_4, window_bounds = array<i64: 1, 128>}, {pipeline_mode = #tpu.pipeline_mode<synchronous>, transform_indices = @transform_5, window_bounds = array<i64: 1, 128>}, {pipeline_mode = #tpu.pipeline_mode<synchronous>, transform_indices = @transform_6, window_bounds = array<i64: 1, 128>}, {transform_indices = @transform_7, window_bounds = array<i64: 8, 128>}]} {
    %c0 = arith.constant 0 : index
    %c0_0 = arith.constant 0 : index
    %0 = vector.load %arg1[%c0, %c0_0] : memref<8x128xbf16, #tpu.memory_space<vmem>>, vector<8x128xbf16>
    %c0_1 = arith.constant 0 : index
    %c0_2 = arith.constant 0 : index
    %1 = vector.load %arg2[%c0_1, %c0_2] : memref<128x128xbf16, #tpu.memory_space<vmem>>, vector<128x128xbf16>
    %cst = arith.constant dense<0.000000e+00> : vector<8x128xf32>
    %2 = tpu.matmul %0, %1, %cst {dimension_numbers = #tpu.dot_dimension_numbers<[1], [0], [0], [1], [0, 0, 1, 1], [], []>} : vector<8x128xbf16>, vector<128x128xbf16>, vector<8x128xf32> -> vector<8x128xf32>
    %c0_3 = arith.constant 0 : index
    %c0_4 = arith.constant 0 : index
    %3 = vector.load %arg3[%c0_3, %c0_4] : memref<1x128xf32, #tpu.memory_space<vmem>>, vector<1x128xf32>
    %4 = vector.broadcast %3 : vector<1x128xf32> to vector<8x128xf32>
    %5 = arith.addf %2, %4 : vector<8x128xf32>
    %cst_5 = arith.constant 5.000000e-01 : f32
    %6 = vector.broadcast %cst_5 : f32 to vector<8x128xf32>
    %7 = arith.mulf %6, %5 : vector<8x128xf32>
    %cst_6 = arith.constant 0.707106769 : f32
    %8 = vector.broadcast %cst_6 : f32 to vector<8x128xf32>
    %9 = arith.mulf %5, %8 : vector<8x128xf32>
    %10 = math.erf %9 : vector<8x128xf32>
    %cst_7 = arith.constant 1.000000e+00 : f32
    %11 = vector.broadcast %cst_7 : f32 to vector<8x128xf32>
    %12 = arith.addf %11, %10 : vector<8x128xf32>
    %13 = arith.mulf %7, %12 : vector<8x128xf32>
    %14 = arith.truncf %13 : vector<8x128xf32> to vector<8x128xbf16>
    %c0_8 = arith.constant 0 : index
    %c0_9 = arith.constant 0 : index
    %15 = vector.load %arg4[%c0_8, %c0_9] : memref<128x128xbf16, #tpu.memory_space<vmem>>, vector<128x128xbf16>
    %cst_10 = arith.constant dense<0.000000e+00> : vector<8x128xf32>
    %16 = tpu.matmul %14, %15, %cst_10 {dimension_numbers = #tpu.dot_dimension_numbers<[1], [0], [0], [1], [0, 0, 1, 1], [], []>} : vector<8x128xbf16>, vector<128x128xbf16>, vector<8x128xf32> -> vector<8x128xf32>
    %c0_11 = arith.constant 0 : index
    %c0_12 = arith.constant 0 : index
    %17 = vector.load %arg5[%c0_11, %c0_12] : memref<1x128xf32, #tpu.memory_space<vmem>>, vector<1x128xf32>
    %18 = vector.broadcast %17 : vector<1x128xf32> to vector<8x128xf32>
    %19 = arith.addf %16, %18 : vector<8x128xf32>
    %20 = arith.addf %19, %5 : vector<8x128xf32>
    %cst_13 = arith.constant dense<0.000000e+00> : vector<8xf32>
    %21 = vector.multi_reduction <add>, %20, %cst_13 [1] : vector<8x128xf32> to vector<8xf32>
    %22 = vector.shape_cast %21 : vector<8xf32> to vector<8x1xf32>
    %23 = arith.mulf %20, %20 : vector<8x128xf32>
    %cst_14 = arith.constant dense<0.000000e+00> : vector<8xf32>
    %24 = vector.multi_reduction <add>, %23, %cst_14 [1] : vector<8x128xf32> to vector<8xf32>
    %25 = vector.shape_cast %24 : vector<8xf32> to vector<8x1xf32>
    %cst_15 = arith.constant 1.562500e-02 : f32
    %26 = vector.broadcast %cst_15 : f32 to vector<8x1xf32>
    %27 = arith.mulf %22, %26 : vector<8x1xf32>
    %cst_16 = arith.constant 1.562500e-02 : f32
    %28 = vector.broadcast %cst_16 : f32 to vector<8x1xf32>
    %29 = arith.mulf %25, %28 : vector<8x1xf32>
    %30 = arith.mulf %27, %27 : vector<8x1xf32>
    %31 = arith.subf %29, %30 : vector<8x1xf32>
    %32 = vector.broadcast %27 : vector<8x1xf32> to vector<8x128xf32>
    %33 = arith.subf %20, %32 : vector<8x128xf32>
    %cst_17 = arith.constant 9.99999974E-6 : f32
    %34 = vector.broadcast %cst_17 : f32 to vector<8x1xf32>
    %35 = arith.addf %31, %34 : vector<8x1xf32>
    %36 = math.rsqrt %35 : vector<8x1xf32>
    %37 = vector.broadcast %36 : vector<8x1xf32> to vector<8x128xf32>
    %38 = arith.mulf %33, %37 : vector<8x128xf32>
    %c0_18 = arith.constant 0 : index
    %c0_19 = arith.constant 0 : index
    %39 = vector.load %arg6[%c0_18, %c0_19] : memref<1x128xf32, #tpu.memory_space<vmem>>, vector<1x128xf32>
    %40 = vector.broadcast %39 : vector<1x128xf32> to vector<8x128xf32>
    %41 = arith.mulf %38, %40 : vector<8x128xf32>
    %c0_20 = arith.constant 0 : index
    %c0_21 = arith.constant 0 : index
    %42 = vector.load %arg7[%c0_20, %c0_21] : memref<1x128xf32, #tpu.memory_space<vmem>>, vector<1x128xf32>
    %43 = vector.broadcast %42 : vector<1x128xf32> to vector<8x128xf32>
    %44 = arith.addf %41, %43 : vector<8x128xf32>
    %c0_22 = arith.constant 0 : index
    %c0_23 = arith.constant 0 : index
    %45 = vector.load %arg8[%c0_22, %c0_23] : memref<8x128xf32, #tpu.memory_space<vmem>>, vector<8x128xf32>
    tpu.vector_store %arg8[%c0_22, %c0_23], %44 {strides = array<i32>} : memref<8x128xf32, #tpu.memory_space<vmem>>, vector<8x128xf32>,
    return
  }
  func.func @transform_0(%arg0: i32) -> (i32, i32) {
    %c0_i32 = arith.constant 0 : i32
    %c0_i32_0 = arith.constant 0 : i32
    return %arg0, %c0_i32 : i32, i32
  }
  func.func @transform_1(%arg0: i32) -> (i32, i32) {
    %c0_i32 = arith.constant 0 : i32
    %c0_i32_0 = arith.constant 0 : i32
    %c0_i32_1 = arith.constant 0 : i32
    return %c0_i32, %c0_i32_0 : i32, i32
  }
  func.func @transform_2(%arg0: i32) -> (i32, i32) {
    %c0_i32 = arith.constant 0 : i32
    %c0_i32_0 = arith.constant 0 : i32
    %c0_i32_1 = arith.constant 0 : i32
    return %c0_i32, %c0_i32_0 : i32, i32
  }
  func.func @transform_3(%arg0: i32) -> (i32, i32) {
    %c0_i32 = arith.constant 0 : i32
    %c0_i32_0 = arith.constant 0 : i32
    %c0_i32_1 = arith.constant 0 : i32
    return %c0_i32, %c0_i32_0 : i32, i32
  }
  func.func @transform_4(%arg0: i32) -> (i32, i32) {
    %c0_i32 = arith.constant 0 : i32
    %c0_i32_0 = arith.constant 0 : i32
    %c0_i32_1 = arith.constant 0 : i32
    return %c0_i32, %c0_i32_0 : i32, i32
  }
  func.func @transform_5(%arg0: i32) -> (i32, i32) {
    %c0_i32 = arith.constant 0 : i32
    %c0_i32_0 = arith.constant 0 : i32
    %c0_i32_1 = arith.constant 0 : i32
    return %c0_i32, %c0_i32_0 : i32, i32
  }
  func.func @transform_6(%arg0: i32) -> (i32, i32) {
    %c0_i32 = arith.constant 0 : i32
    %c0_i32_0 = arith.constant 0 : i32
    %c0_i32_1 = arith.constant 0 : i32
    return %c0_i32, %c0_i32_0 : i32, i32
  }
  func.func @transform_7(%arg0: i32) -> (i32, i32) {
    %c0_i32 = arith.constant 0 : i32
    %c0_i32_0 = arith.constant 0 : i32
    return %arg0, %c0_i32 : i32, i32
  }
}

</mosaic_0001>

<llo_original>
// kernel: tpu_custom_call.1
$region0: #{tpu_custom_call.1}
  #allocation0 [shape = 'u32[]', space=smem, size = 0x4, offset = 0x4, fixed_abs, tag = 'smem constant byte address 0x4 - core index']
  #allocation1 [shape = 'u32[72,128]{1,0:T(1,128)}', space=vmem, size = 0x9000, scoped, tag = 'internal scratch']
  %s0 = inlined_call_operand.hbm [shape: bf16[8,128], index: 0, kind: input, shape index: {}]
  %s1 = inlined_call_operand.hbm [shape: bf16[128,128], index: 1, kind: input, shape index: {}]
  %s2 = inlined_call_operand.vmem [shape: f32[1,128], index: 2, kind: input, shape index: {}]
  %s3 = inlined_call_operand.hbm [shape: bf16[128,128], index: 3, kind: input, shape index: {}]
  %s4 = inlined_call_operand.vmem [shape: f32[1,128], index: 4, kind: input, shape index: {}]
  %s5 = inlined_call_operand.vmem [shape: f32[1,128], index: 5, kind: input, shape index: {}]
  %s6 = inlined_call_operand.vmem [shape: f32[1,128], index: 6, kind: input, shape index: {}]
  %s7 = inlined_call_operand.hbm [shape: f32[8,128], index: 7, kind: output, shape index: {}]
  %s8 = sld [smem:[#allocation0]]
  $region50: #{tpu_custom_call.1} parent=0
    _
  %s10 = ssub.s32 1, %s8
  %s11 = scalar_select 0, %s10, %s8
  $region1: #{tpu_custom_call.1} parent=0
    #allocation2 [shape = 'u8[2048]{0}', space=vmem, size = 0x800, scoped, tag = 'input window, operand 0, single buffered']
    #allocation3 [shape = 's32[1]{0}', space=sflag, size = 0x4, scoped, tag = 'scoped memory for tpu_custom_call.1']
    #allocation4 [shape = 's32[1]{0}', space=sflag, size = 0x4, scoped, tag = 'scoped memory for tpu_custom_call.1']
    #allocation5 [shape = 'u8[32768]{0}', space=vmem, size = 0x8000, scoped, tag = 'input window, operand 1, single buffered']
    #allocation6 [shape = 's32[1]{0}', space=sflag, size = 0x4, scoped, tag = 'scoped memory for tpu_custom_call.1']
    #allocation7 [shape = 'u8[32768]{0}', space=vmem, size = 0x8000, scoped, tag = 'input window, operand 3, single buffered']
    #allocation8 [shape = 'u8[4096]{0}', space=vmem, size = 0x1000, scoped, tag = 'output window, operand 0, single buffered']
    %12 = vsyncpa [#allocation3], 0
    %13 = vsyncpa [#allocation6], 0
    %14 = vsyncpa [#allocation4], 0
    // Predicated region
    $region2: #{tpu_custom_call.1} parent=1 // pred_check
      _
    $region3: #{tpu_custom_call.1} parent=1 // pred_check_branch
      %16 = sbr.rel (0) target = $region5
    $region4: #{tpu_custom_call.1} parent=1 // pred_region
      %18 = vsyncadd [#allocation3], 0
      %s20 = sshll.u32 %s0, 4
      %s21 = int_to_ptr.hbm [resolvable:$true] %s20
      %s22 = sshll.u32 [#allocation2], 4
      %s23 = int_to_ptr.vmem [resolvable:$true] %s22
      %25 = dma.hbm_to_vmem [thread:$0]  %s21, 64, %s23, [#allocation3]
    $region5: #{tpu_custom_call.1} parent=1 // pred_fallthru
      _
    // Predicated region
    $region6: #{tpu_custom_call.1} parent=1 // pred_check
      _
    $region7: #{tpu_custom_call.1} parent=1 // pred_check_branch
      %27 = sbr.rel (0) target = $region9
    $region8: #{tpu_custom_call.1} parent=1 // pred_region
      %29 = vsyncadd [#allocation6], 0
      %s30 = sshll.u32 %s1, 4
      %s31 = int_to_ptr.hbm [resolvable:$true] %s30
      %s32 = sshll.u32 [#allocation5], 4
      %s33 = int_to_ptr.vmem [resolvable:$true] %s32
      %38 = dma.hbm_to_vmem [thread:$0]  %s31, 1024, %s33, [#allocation6], 64, 64, 4
    $region9: #{tpu_custom_call.1} parent=1 // pred_fallthru
      _
    // Predicated region
    $region10: #{tpu_custom_call.1} parent=1 // pred_check
      _
    $region11: #{tpu_custom_call.1} parent=1 // pred_check_branch
      %40 = sbr.rel (0) target = $region13
    $region12: #{tpu_custom_call.1} parent=1 // pred_region
      _
    $region13: #{tpu_custom_call.1} parent=1 // pred_fallthru
      _
    // Predicated region
    $region14: #{tpu_custom_call.1} parent=1 // pred_check
      _
    $region15: #{tpu_custom_call.1} parent=1 // pred_check_branch
      %42 = sbr.rel (0) target = $region17
    $region16: #{tpu_custom_call.1} parent=1 // pred_region
      %44 = vsyncadd [#allocation6], 0
      %s45 = sshll.u32 %s3, 4
      %s46 = int_to_ptr.hbm [resolvable:$true] %s45
      %s47 = sshll.u32 [#allocation7], 4
      %s48 = int_to_ptr.vmem [resolvable:$true] %s47
      %53 = dma.hbm_to_vmem [thread:$0]  %s46, 1024, %s48, [#allocation6], 64, 64, 4
    $region17: #{tpu_custom_call.1} parent=1 // pred_fallthru
      _
    // Predicated region
    $region18: #{tpu_custom_call.1} parent=1 // pred_check
      _
    $region19: #{tpu_custom_call.1} parent=1 // pred_check_branch
      %55 = sbr.rel (0) target = $region21
    $region20: #{tpu_custom_call.1} parent=1 // pred_region
      _
    $region21: #{tpu_custom_call.1} parent=1 // pred_fallthru
      _
    // Predicated region
    $region22: #{tpu_custom_call.1} parent=1 // pred_check
      _
    $region23: #{tpu_custom_call.1} parent=1 // pred_check_branch
      %57 = sbr.rel (0) target = $region25
    $region24: #{tpu_custom_call.1} parent=1 // pred_region
      _
    $region25: #{tpu_custom_call.1} parent=1 // pred_fallthru
      _
    // Predicated region
    $region26: #{tpu_custom_call.1} parent=1 // pred_check
      _
    $region27: #{tpu_custom_call.1} parent=1 // pred_check_branch
      %59 = sbr.rel (0) target = $region29
    $region28: #{tpu_custom_call.1} parent=1 // pred_region
      _
    $region29: #{tpu_custom_call.1} parent=1 // pred_fallthru
      _
    // Predicated region
    $region30: #{tpu_custom_call.1} parent=1 // pred_check
      _
    $region31: #{tpu_custom_call.1} parent=1 // pred_check_branch
      %61 = sbr.rel (0) target = $region33
    $region32: #{tpu_custom_call.1} parent=1 // pred_region
      %63 = dma.done [#allocation3], 64
    $region33: #{tpu_custom_call.1} parent=1 // pred_fallthru
      _
    // Predicated region
    $region34: #{tpu_custom_call.1} parent=1 // pred_check
      _
    $region35: #{tpu_custom_call.1} parent=1 // pred_check_branch
      %65 = sbr.rel (0) target = $region37
    $region36: #{tpu_custom_call.1} parent=1 // pred_region
      %67 = dma.done [#allocation6], 1024
    $region37: #{tpu_custom_call.1} parent=1 // pred_fallthru
      _
    // Predicated region
    $region38: #{tpu_custom_call.1} parent=1 // pred_check
      _
    $region39: #{tpu_custom_call.1} parent=1 // pred_check_branch
      %69 = sbr.rel (0) target = $region41
    $region40: #{tpu_custom_call.1} parent=1 // pred_region
      %71 = dma.done [#allocation6], 1024
    $region41: #{tpu_custom_call.1} parent=1 // pred_fallthru
      _
    %v72 = vld [vmem:[#allocation2] sm:$0xf]
    %v73 = vld [vmem:[#allocation5] sm:$0xf]
    %v74 = vld [vmem:[#allocation5 + $0x4] sm:$0xf]
    %v75 = vld [vmem:[#allocation5 + $0x8] sm:$0xf]
    %v76 = vld [vmem:[#allocation5 + $0xc] sm:$0xf]
    %v77 = vld [vmem:[#allocation5 + $0x10] sm:$0xf]
    %v78 = vld [vmem:[#allocation5 + $0x14] sm:$0xf]
    %v79 = vld [vmem:[#allocation5 + $0x18] sm:$0xf]
    %v80 = vld [vmem:[#allocation5 + $0x1c] sm:$0xf]
    %v81 = vld [vmem:[#allocation5 + $0x20] sm:$0xf]
    %v82 = vld [vmem:[#allocation5 + $0x24] sm:$0xf]
    %v83 = vld [vmem:[#allocation5 + $0x28] sm:$0xf]
    %v84 = vld [vmem:[#allocation5 + $0x2c] sm:$0xf]
    %v85 = vld [vmem:[#allocation5 + $0x30] sm:$0xf]
    %v86 = vld [vmem:[#allocation5 + $0x34] sm:$0xf]
    %v87 = vld [vmem:[#allocation5 + $0x38] sm:$0xf]
    %v88 = vld [vmem:[#allocation5 + $0x3c] sm:$0xf]
    %v89 = vld [vmem:[%s2] sm:$0x1]
    %v91 = vperm.slane %v89, 0
    %v109 = vunpack.c.l.b16 %v73
    %v110 = vunpack.c.l.b16 %v74
    %v111 = vunpack.c.l.b16 %v75
    %v112 = vunpack.c.l.b16 %v76
    %v113 = vunpack.c.l.b16 %v77
    %v114 = vunpack.c.l.b16 %v78
    %v115 = vunpack.c.l.b16 %v79
    %v116 = vunpack.c.l.b16 %v80
    %v117 = vunpack.c.l.b16 %v81
    %v118 = vunpack.c.l.b16 %v82
    %v119 = vunpack.c.l.b16 %v83
    %v120 = vunpack.c.l.b16 %v84
    %v121 = vunpack.c.l.b16 %v85
    %v122 = vunpack.c.l.b16 %v86
    %v123 = vunpack.c.l.b16 %v87
    %v124 = vunpack.c.l.b16 %v88
    %v125 = vpack.c.b16 %v110, %v109
    %v126 = vpack.c.b16 %v112, %v111
    %v127 = vpack.c.b16 %v114, %v113
    %v128 = vpack.c.b16 %v116, %v115
    %v129 = vpack.c.b16 %v118, %v117
    %v130 = vpack.c.b16 %v120, %v119
    %v131 = vpack.c.b16 %v122, %v121
    %v132 = vpack.c.b16 %v124, %v123
    %141 = vmatpush.bf16.msra.mxu0 %v132
    %142 = vmatpush.bf16.msra.mxu0 %v131
    %143 = vmatpush.bf16.msra.mxu0 %v130
    %144 = vmatpush.bf16.msra.mxu0 %v129
    %145 = vmatpush.bf16.msra.mxu0 %v128
    %146 = vmatpush.bf16.msra.mxu0 %v127
    %147 = vmatpush.bf16.msra.mxu0 %v126
    %148 = vmatpush.bf16.msra.mxu0 %v125
    %149 = vmatmul.bf16.gmra.mxu0 %v72
    %v150 = vpop.f32.mrf.mxu0
    %v151 = vadd.f32 %v91, %v150
    %v152 = vpop.f32.mrf.mxu0
    %153 = vdwg.mxu0
    %v154 = vmul.f32 %v151, 0.5
    %v155 = vmul.f32 %v151, 0.70710677
    %v156 = vmul.f32 %v155, %v155
    %v157 = vmin.f32 16.0, %v156
    %v158 = vmul.f32 %v157, 2.1237322e-06
    %v159 = vadd.f32 %v158, 0.00028619796
    %v160 = vmul.f32 %v157, %v159
    %v161 = vadd.f32 %v160, 0.0036580483
    %v162 = vmul.f32 %v157, %v161
    %v163 = vadd.f32 %v162, 0.05243302
    %v164 = vmul.f32 %v157, %v163
    %v165 = vadd.f32 %v164, 0.18741608
    %v166 = vmul.f32 %v157, %v165
    %v167 = vadd.f32 %v166, 1.1283791
    %v168 = vmul.f32 %v155, %v167
    %v169 = vmul.f32 %v157, 3.8918573e-05
    %v170 = vadd.f32 %v169, 0.001143296
    %v171 = vmul.f32 %v157, %v170
    %v172 = vadd.f32 %v171, 0.014752088
    %v173 = vmul.f32 %v157, %v172
    %v174 = vadd.f32 %v173, 0.112945676
    %v175 = vmul.f32 %v157, %v174
    %v176 = vadd.f32 %v175, 0.4994258
    %v177 = vmul.f32 %v157, %v176
    %v178 = vadd.f32 %v177, 1.0
    %v179 = vrcp.pop %v178
    %v180 = vmul.f32 %v178, %v179
    %v181 = vsub.f32 1.0, %v180
    %v182 = vmul.f32 %v179, %v181
    %v183 = vadd.f32 %v179, %v182
    %vm184 = vweird.f32 %v178
    %vm185 = vweird.f32 %v179
    %vm186 = vmor %vm184, %vm185
    %v187 = vsel %vm186, %v179, %v183
    %v188 = vand.u32 2147483647, %v178
    %vm189 = vcmp.eq.f32.partialorder %v188, 8.507059e+37
    %v190 = vand.u32 %v178, 2147483648
    %v191 = vor.u32 1.1754944e-38, %v190
    %v192 = vsel %vm189, %v191, %v187
    %v193 = vmul.f32 %v168, %v192
    %v194 = vmin.f32 %v193, 1.0
    %v195 = vmax.f32 %v194, -1.0
    %v196 = vadd.f32 %v195, 1.0
    %v197 = vmul.f32 %v154, %v196
    %v198 = vpack.c.bf16 %v197, %v197
    %v199 = vld [vmem:[#allocation7] sm:$0xf]
    %v200 = vld [vmem:[#allocation7 + $0x4] sm:$0xf]
    %v201 = vld [vmem:[#allocation7 + $0x8] sm:$0xf]
    %v202 = vld [vmem:[#allocation7 + $0xc] sm:$0xf]
    %v203 = vld [vmem:[#allocation7 + $0x10] sm:$0xf]
    %v204 = vld [vmem:[#allocation7 + $0x14] sm:$0xf]
    %v205 = vld [vmem:[#allocation7 + $0x18] sm:$0xf]
    %v206 = vld [vmem:[#allocation7 + $0x1c] sm:$0xf]
    %v207 = vld [vmem:[#allocation7 + $0x20] sm:$0xf]
    %v208 = vld [vmem:[#allocation7 + $0x24] sm:$0xf]
    %v209 = vld [vmem:[#allocation7 + $0x28] sm:$0xf]
    %v210 = vld [vmem:[#allocation7 + $0x2c] sm:$0xf]
    %v211 = vld [vmem:[#allocation7 + $0x30] sm:$0xf]
    %v212 = vld [vmem:[#allocation7 + $0x34] sm:$0xf]
    %v213 = vld [vmem:[#allocation7 + $0x38] sm:$0xf]
    %v214 = vld [vmem:[#allocation7 + $0x3c] sm:$0xf]
    %v215 = vld [vmem:[%s4] sm:$0x1]
    %v217 = vperm.slane %v215, 0
    %v235 = vunpack.c.l.b16 %v199
    %v236 = vunpack.c.l.b16 %v200
    %v237 = vunpack.c.l.b16 %v201
    %v238 = vunpack.c.l.b16 %v202
    %v239 = vunpack.c.l.b16 %v203
    %v240 = vunpack.c.l.b16 %v204
    %v241 = vunpack.c.l.b16 %v205
    %v242 = vunpack.c.l.b16 %v206
    %v243 = vunpack.c.l.b16 %v207
    %v244 = vunpack.c.l.b16 %v208
    %v245 = vunpack.c.l.b16 %v209
    %v246 = vunpack.c.l.b16 %v210
    %v247 = vunpack.c.l.b16 %v211
    %v248 = vunpack.c.l.b16 %v212
    %v249 = vunpack.c.l.b16 %v213
    %v250 = vunpack.c.l.b16 %v214
    %v251 = vpack.c.b16 %v236, %v235
    %v252 = vpack.c.b16 %v238, %v237
    %v253 = vpack.c.b16 %v240, %v239
    %v254 = vpack.c.b16 %v242, %v241
    %v255 = vpack.c.b16 %v244, %v243
    %v256 = vpack.c.b16 %v246, %v245
    %v257 = vpack.c.b16 %v248, %v247
    %v258 = vpack.c.b16 %v250, %v249
    %267 = vmatpush.bf16.msra.mxu0 %v258
    %268 = vmatpush.bf16.msra.mxu0 %v257
    %269 = vmatpush.bf16.msra.mxu0 %v256
    %270 = vmatpush.bf16.msra.mxu0 %v255
    %271 = vmatpush.bf16.msra.mxu0 %v254
    %272 = vmatpush.bf16.msra.mxu0 %v253
    %273 = vmatpush.bf16.msra.mxu0 %v252
    %274 = vmatpush.bf16.msra.mxu0 %v251
    %275 = vmatmul.bf16.gmra.mxu0 %v198
    %v276 = vpop.f32.mrf.mxu0
    %v277 = vadd.f32 %v217, %v276
    %v278 = vpop.f32.mrf.mxu0
    %279 = vdwg.mxu0
    %v280 = vadd.f32 %v277, %v151
    %281 = vadd.xlane.f32.xlu0 %v280
    %v282 = vpop.xlane.xlu0 %281
    %v283 = vmul.f32 %v280, %v280
    %284 = vadd.xlane.f32.xlu0 %v283
    %v285 = vpop.xlane.xlu0 %284
    %v286 = vmul.f32 %v282, 0.015625
    %v287 = vmul.f32 %v285, 0.015625
    %v288 = vmul.f32 %v286, %v286
    %v289 = vsub.f32 %v287, %v288
    %v290 = vsub.f32 %v280, %v286
    %v291 = vadd.f32 %v289, 1e-05
    %v292 = vrsqrt.pop %v291
    %v293 = vmul.f32 %v292, %v291
    %v294 = vmul.f32 %v293, %v292
    %v295 = vmul.f32 0.5, %v294
    %v296 = vsub.f32 1.5, %v295
    %v297 = vmul.f32 %v292, %v296
    %vm298 = vweird.f32 %v291
    %vm299 = vweird.f32 %v292
    %vm300 = vmor %vm298, %vm299
    %v301 = vsel %vm300, %v292, %v297
    %v302 = vmul.f32 %v290, %v301
    %v303 = vld [vmem:[%s5] sm:$0x1]
    %v305 = vperm.slane %v303, 0
    %v307 = vmul.f32 %v302, %v305
    %v308 = vld [vmem:[%s6] sm:$0x1]
    %v310 = vperm.slane %v308, 0
    %v312 = vadd.f32 %v307, %v310
    %313 = vst [vmem:[#allocation8] sm:$0xff] %v312
    // Predicated region
    $region42: #{tpu_custom_call.1} parent=1 // pred_check
      _
    $region43: #{tpu_custom_call.1} parent=1 // pred_check_branch
      %315 = sbr.rel (0) target = $region45
    $region44: #{tpu_custom_call.1} parent=1 // pred_region
      %317 = vsyncadd [#allocation4], 0
      %s319 = sshll.u32 [#allocation8], 4
      %s320 = int_to_ptr.vmem [resolvable:$true] %s319
      %s321 = sshll.u32 %s7, 4
      %s322 = int_to_ptr.hbm [resolvable:$true] %s321
      %324 = dma.vmem_to_hbm [thread:$0]  %s320, 128, %s322, [#allocation4]
    $region45: #{tpu_custom_call.1} parent=1 // pred_fallthru
      _
    // Predicated region
    $region46: #{tpu_custom_call.1} parent=1 // pred_check
      _
    $region47: #{tpu_custom_call.1} parent=1 // pred_check_branch
      %326 = sbr.rel (0) target = $region49
    $region48: #{tpu_custom_call.1} parent=1 // pred_region
      %328 = dma.done [#allocation4], 128
    $region49: #{tpu_custom_call.1} parent=1 // pred_fallthru
      _
    %329 = vsyncpa [#allocation3], 1
    %330 = vsyncpa [#allocation6], 1
    %331 = vsyncpa [#allocation4], 1

</llo_original>
